<compile_context>
chip_gen: v7x
topology: tpu7x:2x2x1
jax: 0.10.0
libtpu: 0.0.40
codegen_flags: <defaults>
</compile_context>

<pallas_src>
import functools

import jax
import jax.numpy as jnp
from jax.experimental import pallas as pl
from jax.experimental.pallas import tpu as pltpu


def _round_up(n, m):
    return ((n + m - 1) // m) * m


def _ac_fused_kernel(act_dim, x_ref, w1_ref, b1_ref, w23_ref, b23_ref,
                     probs_ref, value_ref):
    """One batch tile: fc1+relu, fused (action|value) head, masked softmax.

    Fused head columns: [0, act_dim) -> action logits, act_dim -> state value,
    rest -> zero lane padding (masked out of the softmax).
    """
    x = x_ref[...]

    # fc1 + relu  (MXU matmul, f32 accumulation)
    h = jnp.dot(x, w1_ref[...], preferred_element_type=jnp.float32)
    h = jnp.maximum(h + b1_ref[...], 0.0)

    # Fused action+value head: single matmul into a narrow (TB, n_out) slab.
    out = jnp.dot(h, w23_ref[...], preferred_element_type=jnp.float32)
    out = out + b23_ref[...]

    lane = jax.lax.broadcasted_iota(jnp.int32, out.shape, 1)
    is_logit = lane < act_dim

    # Softmax over the real logit lanes only (value + padded lanes masked out).
    logits = jnp.where(is_logit, out, -jnp.inf)
    m = jnp.max(logits, axis=-1, keepdims=True)
    e = jnp.where(is_logit, jnp.exp(logits - m), 0.0)
    denom = jnp.sum(e, axis=-1, keepdims=True)
    probs = e / denom  # exact division: keeps the 1e-5 tolerance

    # Real-shaped outputs: only act_dim + 1 f32 lanes per row ever hit HBM.
    probs_ref[...] = probs[:, :act_dim].astype(probs_ref.dtype)
    value_ref[...] = jnp.sum(
        jnp.where(lane == act_dim, out, 0.0), axis=-1, keepdims=True
    ).astype(value_ref.dtype)


def actor_critic_forward(x, params, block_b=1024):
    """x: (B, obs_dim) f32. params: dict of pre-transposed weights/biases.

    Returns (probs (B, act_dim), value (B, 1)).
    """
    w1, b1 = params["w1"], params["b1"]   # (obs_dim, 32), (1, 32)
    w2, b2 = params["w2"], params["b2"]   # (32, act_dim), (1, act_dim)
    w3, b3 = params["w3"], params["b3"]   # (32, 1),       (1, 1)

    B, obs_dim = x.shape
    act_dim = w2.shape[1]

    # --- Fuse the two heads; pad fused width only to a multiple of 8 ---
    n_real = act_dim + 1
    n_out = _round_up(n_real, 8)
    w23 = jnp.pad(jnp.concatenate([w2, w3], axis=1),
                  ((0, 0), (0, n_out - n_real)))          # (32, n_out)
    b23 = jnp.pad(jnp.concatenate([b2, b3], axis=1),
                  ((0, 0), (0, n_out - n_real)))          # (1,  n_out)

    # --- Batch tile: multiple of 8; big enough to amortize per-step overhead,
    #     small enough that large batches give >= 4 blocks (both v7x TCs busy) ---
    TB = min(block_b, max(8, _round_up(pl.cdiv(B, 4), 8)))
    n_blocks = pl.cdiv(B, TB)   # ragged last block: OOB rows are discarded

    kernel = functools.partial(_ac_fused_kernel, act_dim)
    pinned = lambda a: pl.BlockSpec(a.shape, lambda i: (0,) * a.ndim)

    probs, value = pl.pallas_call(
        kernel,
        out_shape=(
            jax.ShapeDtypeStruct((B, act_dim), jnp.float32),
            jax.ShapeDtypeStruct((B, 1), jnp.float32),
        ),
        grid=(n_blocks,),
        in_specs=[
            pl.BlockSpec((TB, obs_dim), lambda i: (i, 0)),  # x: tiled over batch
            pinned(w1),                                     # weights VMEM-resident
            pinned(b1),
            pinned(w23),
            pinned(b23),
        ],
        out_specs=(
            pl.BlockSpec((TB, act_dim), lambda i: (i, 0)),
            pl.BlockSpec((TB, 1), lambda i: (i, 0)),
        ),
        compiler_params=pltpu.CompilerParams(
            dimension_semantics=("parallel",),              # shard batch across TCs
        ),
    )(x, w1, b1, w23, b23)

    return probs, value


def init_params(key, obs_dim, act_dim, hidden=32):
    """Deterministic init mimicking nn.Linear's uniform(-1/sqrt(fan_in), +)."""
    ks = jax.random.split(key, 6)

    def linear(kw, kb, fan_in, fan_out):
        bound = 1.0 / jnp.sqrt(fan_in)
        # stored as (in, out) so kernel computes x @ W
        w = jax.random.uniform(kw, (fan_in, fan_out), jnp.float32, -bound, bound)
        b = jax.random.uniform(kb, (1, fan_out), jnp.float32, -bound, bound)
        return w, b

    w1, b1 = linear(ks[0], ks[1], obs_dim, hidden)
    w2, b2 = linear(ks[2], ks[3], hidden, act_dim)
    w3, b3 = linear(ks[4], ks[5], hidden, 1)
    return {"w1": w1, "b1": b1, "w2": w2, "b2": b2, "w3": w3, "b3": b3}


def reference_forward(x, p):
    h = jax.nn.relu(x @ p["w1"] + p["b1"])
    probs = jax.nn.softmax(h @ p["w2"] + p["b2"], axis=-1)
    value = h @ p["w3"] + p["b3"]
    return probs, value


if __name__ == "__main__":
    key = jax.random.PRNGKey(0)
    obs_dim, act_dim, batch = 16, 4, 2

    k_x, k_p, k_x2 = jax.random.split(key, 3)
    params = init_params(k_p, obs_dim, act_dim)

    # --- small batch (module's nominal use) ---
    x = jax.random.normal(k_x, (batch, obs_dim), jnp.float32)
    probs, value = actor_critic_forward(x, params)
    jax.block_until_ready((probs, value))

    ref_probs, ref_value = reference_forward(x, params)
    assert probs.shape == (batch, act_dim) and value.shape == (batch, 1)
    assert jnp.allclose(probs, ref_probs, atol=1e-5, rtol=1e-5)
    assert jnp.allclose(value, ref_value, atol=1e-5, rtol=1e-5)
    assert jnp.allclose(jnp.sum(probs, axis=-1), 1.0, atol=1e-5)

    # --- larger, non-aligned batch: exercises the batch grid + ragged last block ---
    big_b = 1000
    x_big = jax.random.normal(k_x2, (big_b, obs_dim), jnp.float32)
    probs_b, value_b = actor_critic_forward(x_big, params)
    jax.block_until_ready((probs_b, value_b))
    ref_probs_b, ref_value_b = reference_forward(x_big, params)
    assert probs_b.shape == (big_b, act_dim) and value_b.shape == (big_b, 1)
    assert jnp.allclose(probs_b, ref_probs_b, atol=1e-5, rtol=1e-5)
    assert jnp.allclose(value_b, ref_value_b, atol=1e-5, rtol=1e-5)

    print("KERNEL_OK")
</pallas_src>

<mosaic_0001>
module attributes {stable_mosaic.version = 11 : i64} {
  func.func @_ac_fused_kernel(%arg0: i32, %arg1: memref<8x16xf32, #tpu.memory_space<vmem>>, %arg2: memref<16x32xf32, #tpu.memory_space<vmem>>, %arg3: memref<1x32xf32, #tpu.memory_space<vmem>>, %arg4: memref<32x8xf32, #tpu.memory_space<vmem>>, %arg5: memref<1x8xf32, #tpu.memory_space<vmem>>, %arg6: memref<8x4xf32, #tpu.memory_space<vmem>>, %arg7: memref<8x1xf32, #tpu.memory_space<vmem>>) attributes {dimension_semantics = [#tpu.dimension_semantics<parallel>], iteration_bounds = array<i64: 1>, scalar_prefetch = 0 : i64, scratch_operands = 0 : i64, tpu.core_type = #tpu.core_type<tc>, window_params = [{transform_indices = @transform_0, window_bounds = array<i64: 8, 16>}, {pipeline_mode = #tpu.pipeline_mode<synchronous>, transform_indices = @transform_1, window_bounds = array<i64: 16, 32>}, {pipeline_mode = #tpu.pipeline_mode<synchronous>, transform_indices = @transform_2, window_bounds = array<i64: 1, 32>}, {pipeline_mode = #tpu.pipeline_mode<synchronous>, transform_indices = @transform_3, window_bounds = array<i64: 32, 8>}, {pipeline_mode = #tpu.pipeline_mode<synchronous>, transform_indices = @transform_4, window_bounds = array<i64: 1, 8>}, {transform_indices = @transform_5, window_bounds = array<i64: 8, 4>}, {transform_indices = @transform_6, window_bounds = array<i64: 8, 1>}]} {
    %c0 = arith.constant 0 : index
    %c0_0 = arith.constant 0 : index
    %0 = vector.load %arg1[%c0, %c0_0] : memref<8x16xf32, #tpu.memory_space<vmem>>, vector<8x16xf32>
    %c0_1 = arith.constant 0 : index
    %c0_2 = arith.constant 0 : index
    %1 = vector.load %arg2[%c0_1, %c0_2] : memref<16x32xf32, #tpu.memory_space<vmem>>, vector<16x32xf32>
    %cst = arith.constant dense<0.000000e+00> : vector<8x32xf32>
    %2 = tpu.matmul %0, %1, %cst {dimension_numbers = #tpu.dot_dimension_numbers<[1], [0], [0], [1], [0, 0, 1, 1], [], []>} : vector<8x16xf32>, vector<16x32xf32>, vector<8x32xf32> -> vector<8x32xf32>
    %c0_3 = arith.constant 0 : index
    %c0_4 = arith.constant 0 : index
    %3 = vector.load %arg3[%c0_3, %c0_4] : memref<1x32xf32, #tpu.memory_space<vmem>>, vector<1x32xf32>
    %4 = vector.broadcast %3 : vector<1x32xf32> to vector<8x32xf32>
    %5 = arith.addf %2, %4 : vector<8x32xf32>
    %cst_5 = arith.constant 0.000000e+00 : f32
    %6 = vector.broadcast %cst_5 : f32 to vector<8x32xf32>
    %7 = arith.maximumf %5, %6 : vector<8x32xf32>
    %c0_6 = arith.constant 0 : index
    %c0_7 = arith.constant 0 : index
    %8 = vector.load %arg4[%c0_6, %c0_7] : memref<32x8xf32, #tpu.memory_space<vmem>>, vector<32x8xf32>
    %cst_8 = arith.constant dense<0.000000e+00> : vector<8x8xf32>
    %9 = tpu.matmul %7, %8, %cst_8 {dimension_numbers = #tpu.dot_dimension_numbers<[1], [0], [0], [1], [0, 0, 1, 1], [], []>} : vector<8x32xf32>, vector<32x8xf32>, vector<8x8xf32> -> vector<8x8xf32>
    %c0_9 = arith.constant 0 : index
    %c0_10 = arith.constant 0 : index
    %10 = vector.load %arg5[%c0_9, %c0_10] : memref<1x8xf32, #tpu.memory_space<vmem>>, vector<1x8xf32>
    %11 = vector.broadcast %10 : vector<1x8xf32> to vector<8x8xf32>
    %12 = arith.addf %9, %11 : vector<8x8xf32>
    %13 = tpu.iota {dimensions = array<i32: 1>} : vector<8x8xi32>
    %c4_i32 = arith.constant 4 : i32
    %14 = vector.broadcast %c4_i32 : i32 to vector<8x8xi32>
    %15 = arith.cmpi slt, %13, %14 : vector<8x8xi32>
    %cst_11 = arith.constant 0xFF800000 : f32
    %16 = vector.broadcast %cst_11 : f32 to vector<8x8xf32>
    %17 = arith.select %15, %12, %16 : vector<8x8xi1>, vector<8x8xf32>
    %cst_12 = arith.constant dense<0xFF800000> : vector<8xf32>
    %18 = vector.multi_reduction <maximumf>, %17, %cst_12 [1] : vector<8x8xf32> to vector<8xf32>
    %19 = vector.shape_cast %18 : vector<8xf32> to vector<8x1xf32>
    %20 = vector.broadcast %19 : vector<8x1xf32> to vector<8x8xf32>
    %21 = arith.subf %17, %20 : vector<8x8xf32>
    %22 = math.exp %21 : vector<8x8xf32>
    %cst_13 = arith.constant 0.000000e+00 : f32
    %23 = vector.broadcast %cst_13 : f32 to vector<8x8xf32>
    %24 = arith.select %15, %22, %23 : vector<8x8xi1>, vector<8x8xf32>
    %cst_14 = arith.constant dense<0.000000e+00> : vector<8xf32>
    %25 = vector.multi_reduction <add>, %24, %cst_14 [1] : vector<8x8xf32> to vector<8xf32>
    %26 = vector.shape_cast %25 : vector<8xf32> to vector<8x1xf32>
    %27 = vector.broadcast %26 : vector<8x1xf32> to vector<8x8xf32>
    %28 = arith.divf %24, %27 : vector<8x8xf32>
    %29 = vector.extract_strided_slice %28 {offsets = [0, 0], sizes = [8, 4], strides = [1, 1]} : vector<8x8xf32> to vector<8x4xf32>
    %c0_15 = arith.constant 0 : index
    %c0_16 = arith.constant 0 : index
    %30 = vector.load %arg6[%c0_15, %c0_16] : memref<8x4xf32, #tpu.memory_space<vmem>>, vector<8x4xf32>
    tpu.vector_store %arg6[%c0_15, %c0_16], %29 {strides = array<i32>} : memref<8x4xf32, #tpu.memory_space<vmem>>, vector<8x4xf32>,
    %c4_i32_17 = arith.constant 4 : i32
    %31 = vector.broadcast %c4_i32_17 : i32 to vector<8x8xi32>
    %32 = arith.cmpi eq, %13, %31 : vector<8x8xi32>
    %cst_18 = arith.constant 0.000000e+00 : f32
    %33 = vector.broadcast %cst_18 : f32 to vector<8x8xf32>
    %34 = arith.select %32, %12, %33 : vector<8x8xi1>, vector<8x8xf32>
    %cst_19 = arith.constant dense<0.000000e+00> : vector<8xf32>
    %35 = vector.multi_reduction <add>, %34, %cst_19 [1] : vector<8x8xf32> to vector<8xf32>
    %36 = vector.shape_cast %35 : vector<8xf32> to vector<8x1xf32>
    %c0_20 = arith.constant 0 : index
    %c0_21 = arith.constant 0 : index
    %37 = vector.load %arg7[%c0_20, %c0_21] : memref<8x1xf32, #tpu.memory_space<vmem>>, vector<8x1xf32>
    tpu.vector_store %arg7[%c0_20, %c0_21], %36 {strides = array<i32>} : memref<8x1xf32, #tpu.memory_space<vmem>>, vector<8x1xf32>,
    return
  }
  func.func @transform_0(%arg0: i32) -> (i32, i32) {
    %c0_i32 = arith.constant 0 : i32
    %c0_i32_0 = arith.constant 0 : i32
    return %arg0, %c0_i32 : i32, i32
  }
  func.func @transform_1(%arg0: i32) -> (i32, i32) {
    %c0_i32 = arith.constant 0 : i32
    %c0_i32_0 = arith.constant 0 : i32
    %c0_i32_1 = arith.constant 0 : i32
    return %c0_i32, %c0_i32_0 : i32, i32
  }
  func.func @transform_2(%arg0: i32) -> (i32, i32) {
    %c0_i32 = arith.constant 0 : i32
    %c0_i32_0 = arith.constant 0 : i32
    %c0_i32_1 = arith.constant 0 : i32
    return %c0_i32, %c0_i32_0 : i32, i32
  }
  func.func @transform_3(%arg0: i32) -> (i32, i32) {
    %c0_i32 = arith.constant 0 : i32
    %c0_i32_0 = arith.constant 0 : i32
    %c0_i32_1 = arith.constant 0 : i32
    return %c0_i32, %c0_i32_0 : i32, i32
  }
  func.func @transform_4(%arg0: i32) -> (i32, i32) {
    %c0_i32 = arith.constant 0 : i32
    %c0_i32_0 = arith.constant 0 : i32
    %c0_i32_1 = arith.constant 0 : i32
    return %c0_i32, %c0_i32_0 : i32, i32
  }
  func.func @transform_5(%arg0: i32) -> (i32, i32) {
    %c0_i32 = arith.constant 0 : i32
    %c0_i32_0 = arith.constant 0 : i32
    return %arg0, %c0_i32 : i32, i32
  }
  func.func @transform_6(%arg0: i32) -> (i32, i32) {
    %c0_i32 = arith.constant 0 : i32
    %c0_i32_0 = arith.constant 0 : i32
    return %arg0, %c0_i32 : i32, i32
  }
}

</mosaic_0001>

<llo_original>
// kernel: tpu_custom_call.1
$region0: #{tpu_custom_call.1}
  #allocation0 [shape = 'u32[]', space=smem, size = 0x4, offset = 0x4, fixed_abs, tag = 'smem constant byte address 0x4 - core index']
  #allocation1 [shape = 'u32[144,128]{1,0:T(1,128)}', space=vmem, size = 0x12000, scoped, tag = 'internal scratch']
  %s0 = inlined_call_operand.vmem [shape: f32[2,16], index: 0, kind: input, shape index: {}]
  %s1 = inlined_call_operand.vmem [shape: f32[16,32], index: 1, kind: input, shape index: {}]
  %s2 = inlined_call_operand.vmem [shape: f32[1,32], index: 2, kind: input, shape index: {}]
  %s3 = inlined_call_operand.vmem [shape: f32[32,8], index: 3, kind: input, shape index: {}]
  %s4 = inlined_call_operand.vmem [shape: f32[1,8], index: 4, kind: input, shape index: {}]
  %s5 = inlined_call_operand.hbm [shape: f32[2,4], index: 5, kind: output, shape index: {0}]
  %s6 = inlined_call_operand.vmem [shape: f32[2,1], index: 6, kind: output, shape index: {1}]
  %7 = xla_tuple %s5, %s6
  %s8 = sld [smem:[#allocation0]]
  $region68: #{tpu_custom_call.1} parent=0
    _
  %s10 = ssub.s32 1, %s8
  %s11 = scalar_select 0, %s10, %s8
  $region1: #{tpu_custom_call.1} parent=0
    #allocation2 [shape = 'u8[4096]{0}', space=vmem, size = 0x1000, scoped, tag = 'output window, operand 0, single buffered']
    #allocation3 [shape = 's32[1]{0}', space=sflag, size = 0x4, scoped, tag = 'scoped memory for tpu_custom_call.1']
    #allocation4 [shape = 'u8[4096]{0}', space=vmem, size = 0x1000, scoped, tag = 'output window, operand 1, single buffered']
    %12 = vsyncpa [#allocation3], 0
    // Predicated region
    $region2: #{tpu_custom_call.1} parent=1 // pred_check
      _
    $region3: #{tpu_custom_call.1} parent=1 // pred_check_branch
      %14 = sbr.rel (0) target = $region5
    $region4: #{tpu_custom_call.1} parent=1 // pred_region
      _
    $region5: #{tpu_custom_call.1} parent=1 // pred_fallthru
      _
    // Predicated region
    $region6: #{tpu_custom_call.1} parent=1 // pred_check
      _
    $region7: #{tpu_custom_call.1} parent=1 // pred_check_branch
      %16 = sbr.rel (0) target = $region9
    $region8: #{tpu_custom_call.1} parent=1 // pred_region
      _
    $region9: #{tpu_custom_call.1} parent=1 // pred_fallthru
      _
    // Predicated region
    $region10: #{tpu_custom_call.1} parent=1 // pred_check
      _
    $region11: #{tpu_custom_call.1} parent=1 // pred_check_branch
      %18 = sbr.rel (0) target = $region13
    $region12: #{tpu_custom_call.1} parent=1 // pred_region
      _
    $region13: #{tpu_custom_call.1} parent=1 // pred_fallthru
      _
    // Predicated region
    $region14: #{tpu_custom_call.1} parent=1 // pred_check
      _
    $region15: #{tpu_custom_call.1} parent=1 // pred_check_branch
      %20 = sbr.rel (0) target = $region17
    $region16: #{tpu_custom_call.1} parent=1 // pred_region
      _
    $region17: #{tpu_custom_call.1} parent=1 // pred_fallthru
      _
    // Predicated region
    $region18: #{tpu_custom_call.1} parent=1 // pred_check
      _
    $region19: #{tpu_custom_call.1} parent=1 // pred_check_branch
      %22 = sbr.rel (0) target = $region21
    $region20: #{tpu_custom_call.1} parent=1 // pred_region
      _
    $region21: #{tpu_custom_call.1} parent=1 // pred_fallthru
      _
    %v23 = vld [vmem:[%s0] sm:$0xff]
    %v24 = vld [vmem:[%s1] sm:$0xff]
    %v25 = vld [vmem:[%s1 + $0x8] sm:$0xff]
    %v26 = vld [vmem:[%s2] sm:$0x1]
    %v28 = vlaneseq
    %v29 = vshrl.u32 %v28, 7
    %v30 = vsub.s32 0, %v29
    %v31 = vrot.slane %v26, %v30
    %vm33 = vcmask 130048
    %v35 = vsel %vm33, %v23, 0
    %37 = vmatprep.subr.mxu0 0.0
    %38 = vmatpush1.msra.mxu0 %v24
    %39 = vmatprep.subr.mxu0 0.0
    %40 = vmatpush1.msra.mxu0 %v25
    %41 = vmatprep.subr.mxu0 0.0
    %42 = vmatpush1.msra.mxu0 0.0
    %43 = vmatprep.subr.mxu0 0.0
    %44 = vmatpush1.msra.mxu0 0.0
    %45 = vmatprep.subr.mxu0 0.0
    %46 = vmatpush1.msra.mxu0 0.0
    %47 = vmatprep.subr.mxu0 0.0
    %48 = vmatpush1.msra.mxu0 0.0
    %49 = vmatprep.subr.mxu0 0.0
    %50 = vmatpush1.msra.mxu0 0.0
    %51 = vmatprep.subr.mxu0 0.0
    %52 = vmatpush1.msra.mxu0 0.0
    %53 = vmatprep.subr.mxu0 0.0
    %54 = vmatpush1.msra.mxu0 0.0
    %55 = vmatprep.subr.mxu0 0.0
    %56 = vmatpush1.msra.mxu0 0.0
    %57 = vmatprep.subr.mxu0 0.0
    %58 = vmatpush1.msra.mxu0 0.0
    %59 = vmatprep.subr.mxu0 0.0
    %60 = vmatpush1.msra.mxu0 0.0
    %61 = vmatprep.subr.mxu0 0.0
    %62 = vmatpush1.msra.mxu0 0.0
    %63 = vmatprep.subr.mxu0 0.0
    %64 = vmatpush1.msra.mxu0 0.0
    %65 = vmatprep.subr.mxu0 0.0
    %66 = vmatpush1.msra.mxu0 0.0
    %67 = vmatprep.subr.mxu0 0.0
    %68 = vmatpush1.msra.mxu0 0.0
    %69 = vmatprep.subr.mxu0 0.0
    %70 = vmatpush1.msra.mxu0 0.0
    %71 = vmatprep.subr.mxu0 0.0
    %72 = vmatpush1.msra.mxu0 0.0
    %73 = vmatprep.subr.mxu0 0.0
    %74 = vmatpush1.msra.mxu0 0.0
    %75 = vmatprep.subr.mxu0 0.0
    %76 = vmatpush1.msra.mxu0 0.0
    %77 = vmatprep.subr.mxu0 0.0
    %78 = vmatpush1.msra.mxu0 0.0
    %79 = vmatprep.subr.mxu0 0.0
    %80 = vmatpush1.msra.mxu0 0.0
    %81 = vmatprep.subr.mxu0 0.0
    %82 = vmatpush1.msra.mxu0 0.0
    %83 = vmatprep.subr.mxu0 0.0
    %84 = vmatpush1.msra.mxu0 0.0
    %85 = vmatprep.subr.mxu0 0.0
    %86 = vmatpush1.msra.mxu0 0.0
    %87 = vmatprep.subr.mxu0 0.0
    %88 = vmatpush1.msra.mxu0 0.0
    %89 = vmatprep.subr.mxu0 0.0
    %90 = vmatpush1.msra.mxu0 0.0
    %91 = vmatprep.subr.mxu0 0.0
    %92 = vmatpush1.msra.mxu0 0.0
    %93 = vmatprep.subr.mxu0 0.0
    %94 = vmatpush1.msra.mxu0 0.0
    %95 = vmatprep.subr.mxu0 0.0
    %96 = vmatpush1.msra.mxu0 0.0
    %97 = vmatprep.subr.mxu0 0.0
    %98 = vmatpush1.msra.mxu0 0.0
    %99 = vmatprep.subr.mxu0 0.0
    %100 = vmatpush1.msra.mxu0 0.0
    %101 = vmatprep.mubr.f32.mxu0 0.0
    %102 = vmatmul.mubr.f32.gmra.mrb[0].mxu0 %v35
    %v103 = vpop.f32.mrb[0].mxu0
    %v104 = vadd.f32 %v31, %v103
    %v105 = vpop.f32.mrb[0].mxu0
    %106 = vdwg.mxu0
    %v107 = vmax.f32 %v104, 0.0
    %v108 = vld [vmem:[%s3] sm:$0xff]
    %v109 = vld [vmem:[%s3 + $0x8] sm:$0xff]
    %v110 = vld [vmem:[%s3 + $0x10] sm:$0xff]
    %v111 = vld [vmem:[%s3 + $0x18] sm:$0xff]
    %v112 = vld [vmem:[%s4] sm:$0x1]
    %v114 = vlaneseq
    %v115 = vshrl.u32 %v114, 7
    %v116 = vsub.s32 0, %v115
    %v117 = vrot.slane %v112, %v116
    %vm119 = vcmask 261120
    %v121 = vsel %vm119, %v107, 0
    %123 = vmatprep.subr.mxu0 0.0
    %124 = vmatpush1.msra.mxu0 %v108
    %125 = vmatprep.subr.mxu0 0.0
    %126 = vmatpush1.msra.mxu0 %v109
    %127 = vmatprep.subr.mxu0 0.0
    %128 = vmatpush1.msra.mxu0 %v110
    %129 = vmatprep.subr.mxu0 0.0
    %130 = vmatpush1.msra.mxu0 %v111
    %131 = vmatprep.subr.mxu0 0.0
    %132 = vmatpush1.msra.mxu0 0.0
    %133 = vmatprep.subr.mxu0 0.0
    %134 = vmatpush1.msra.mxu0 0.0
    %135 = vmatprep.subr.mxu0 0.0
    %136 = vmatpush1.msra.mxu0 0.0
    %137 = vmatprep.subr.mxu0 0.0
    %138 = vmatpush1.msra.mxu0 0.0
    %139 = vmatprep.subr.mxu0 0.0
    %140 = vmatpush1.msra.mxu0 0.0
    %141 = vmatprep.subr.mxu0 0.0
    %142 = vmatpush1.msra.mxu0 0.0
    %143 = vmatprep.subr.mxu0 0.0
    %144 = vmatpush1.msra.mxu0 0.0
    %145 = vmatprep.subr.mxu0 0.0
    %146 = vmatpush1.msra.mxu0 0.0
    %147 = vmatprep.subr.mxu0 0.0
    %148 = vmatpush1.msra.mxu0 0.0
    %149 = vmatprep.subr.mxu0 0.0
    %150 = vmatpush1.msra.mxu0 0.0
    %151 = vmatprep.subr.mxu0 0.0
    %152 = vmatpush1.msra.mxu0 0.0
    %153 = vmatprep.subr.mxu0 0.0
    %154 = vmatpush1.msra.mxu0 0.0
    %155 = vmatprep.subr.mxu0 0.0
    %156 = vmatpush1.msra.mxu0 0.0
    %157 = vmatprep.subr.mxu0 0.0
    %158 = vmatpush1.msra.mxu0 0.0
    %159 = vmatprep.subr.mxu0 0.0
    %160 = vmatpush1.msra.mxu0 0.0
    %161 = vmatprep.subr.mxu0 0.0
    %162 = vmatpush1.msra.mxu0 0.0
    %163 = vmatprep.subr.mxu0 0.0
    %164 = vmatpush1.msra.mxu0 0.0
    %165 = vmatprep.subr.mxu0 0.0
    %166 = vmatpush1.msra.mxu0 0.0
    %167 = vmatprep.subr.mxu0 0.0
    %168 = vmatpush1.msra.mxu0 0.0
    %169 = vmatprep.subr.mxu0 0.0
    %170 = vmatpush1.msra.mxu0 0.0
    %171 = vmatprep.subr.mxu0 0.0
    %172 = vmatpush1.msra.mxu0 0.0
    %173 = vmatprep.subr.mxu0 0.0
    %174 = vmatpush1.msra.mxu0 0.0
    %175 = vmatprep.subr.mxu0 0.0
    %176 = vmatpush1.msra.mxu0 0.0
    %177 = vmatprep.subr.mxu0 0.0
    %178 = vmatpush1.msra.mxu0 0.0
    %179 = vmatprep.subr.mxu0 0.0
    %180 = vmatpush1.msra.mxu0 0.0
    %181 = vmatprep.subr.mxu0 0.0
    %182 = vmatpush1.msra.mxu0 0.0
    %183 = vmatprep.subr.mxu0 0.0
    %184 = vmatpush1.msra.mxu0 0.0
    %185 = vmatprep.subr.mxu0 0.0
    %186 = vmatpush1.msra.mxu0 0.0
    %187 = vmatprep.mubr.f32.mxu0 0.0
    %188 = vmatmul.mubr.f32.gmra.mrb[0].mxu0 %v121
    %v189 = vpop.f32.mrb[0].mxu0
    %v190 = vadd.f32 %v117, %v189
    %v191 = vpop.f32.mrb[0].mxu0
    %192 = vdwg.mxu0
    %v193 = vlaneseq
    %v194 = vand.u32 %v193, 127
    %vm195 = vcmp.lt.s32.totalorder %v194, 4
    %v196 = vsel %vm195, %v190, -inf
    %vm197 = vcmask 64512
    %v198 = vsel %vm197, %v196, -inf
    %199 = vmax.xlane.f32.xlu0 %v198
    %v200 = vpop.xlane.xlu0 %199
    %v201 = vsub.f32 %v196, %v200
    %v202 = vmul.f32 %v201, 1.442695
    %v203 = vpow.pop %v202
    %v204 = vsel %vm195, %v203, 0.0
    %v205 = vsel %vm197, %v204, 0.0
    %206 = vadd.xlane.f32.xlu0 %v205
    %v207 = vpop.xlane.xlu0 %206
    %v208 = vrcp.pop %v207
    %v209 = vmul.f32 %v204, %v208
    %vm210 = vcmask 31744
    %211 = vst.msk [vmem:[#allocation2] sm:$0xff] %vm210, %v209
    %vm212 = vcmp.eq.s32.totalorder %v194, 4
    %v213 = vsel %vm212, %v190, 0.0
    %v214 = vsel %vm197, %v213, 0.0
    %215 = vadd.xlane.f32.xlu0 %v214
    %v216 = vpop.xlane.xlu0 %215
    %vm217 = vcmask 7168
    %218 = vst.msk [vmem:[#allocation4] sm:$0xff] %vm217, %v216
    // Predicated region
    $region22: #{tpu_custom_call.1} parent=1 // pred_check
      _
    $region23: #{tpu_custom_call.1} parent=1 // pred_check_branch
      %220 = sbr.rel (0) target = $region25
    $region24: #{tpu_custom_call.1} parent=1 // pred_region
      %s222 = ssub.s32 128, 32
      %223 = vsyncadd [#allocation3], %s222
      %s224 = sshll.u32 [#allocation2], 4
      %s225 = int_to_ptr.vmem [resolvable:$true] %s224
      %230 = dma.vmem_to_hbm [thread:$0]  %s225, 32, %s5, [#allocation3], 32, 32, 2
    $region25: #{tpu_custom_call.1} parent=1 // pred_fallthru
      _
    // Predicated region
    $region26: #{tpu_custom_call.1} parent=1 // pred_check
      _
    $region27: #{tpu_custom_call.1} parent=1 // pred_check_branch
      %232 = sbr.rel (0) target = $region29
    $region28: #{tpu_custom_call.1} parent=1 // pred_region
      // Predicated region
      $region30: #{tpu_custom_call.1} parent=28 // pred_check
        _
      $region31: #{tpu_custom_call.1} parent=28 // pred_check_branch
        %234 = sbr.rel (0) target = $region33
      $region32: #{tpu_custom_call.1} parent=28 // pred_region
        // Predicated region
        $region34: #{tpu_custom_call.1} parent=32 // pred_check
          _
        $region35: #{tpu_custom_call.1} parent=32 // pred_check_branch
          %236 = sbr.rel target = $region37
        $region36: #{tpu_custom_call.1} parent=32 // pred_region
          // Predicated region
          $region49: #{tpu_custom_call.1} parent=36 // pred_check
            _
          $region50: #{tpu_custom_call.1} parent=36 // pred_check_branch
            %251 = sbr.rel (0) target = $region52
          $region51: #{tpu_custom_call.1} parent=36 // pred_region
            loop: start=0, step=1, limit=1
            $region53: #{tpu_custom_call.1} parent=51 // loop_pre_header
              _
            $region54: #{tpu_custom_call.1} parent=51 // loop_header
              %s254 = sphi 0, %s258
              %p255 = scmp.ge.s32.totalorder %s254, 1
              %s259 = sphi [#allocation4], [#allocation4]
              %s260 = sphi %s6, %s6
            $region55: #{tpu_custom_call.1} parent=51 // loop_header_branch
              %257 = sbr.rel (%p255) target = $region59
            $region56: #{tpu_custom_call.1} parent=51 // loop_body
              %v261 = vld [vmem:[%s259] sm:$0x3]
              %262 = vst [vmem:[%s260] sm:$0x3] %v261
            $region57: #{tpu_custom_call.1} parent=51 // loop_footer
              %s258 = sadd.s32 1, %s254
            $region58: #{tpu_custom_call.1} parent=51 // loop_footer_branch
              %253 = sbr.rel target = $region54
            $region59: #{tpu_custom_call.1} parent=51 // loop_exit
              _
          $region52: #{tpu_custom_call.1} parent=36 // pred_fallthru
            _
        $region37: #{tpu_custom_call.1} parent=32 // pred_fallthru
          _
        // Predicated region
        $region38: #{tpu_custom_call.1} parent=32 // pred_check
          _
        $region39: #{tpu_custom_call.1} parent=32 // pred_check_branch
          %238 = sbr.rel (0) target = $region41
        $region40: #{tpu_custom_call.1} parent=32 // pred_region
          loop: start=0, step=1, limit=1
          $region42: #{tpu_custom_call.1} parent=40 // loop_pre_header
            _
          $region43: #{tpu_custom_call.1} parent=40 // loop_header
            %s241 = sphi 0, %s245
            %p242 = scmp.ge.s32.totalorder %s241, 1
            %s246 = sphi [#allocation4], [#allocation4]
            %s247 = sphi %s6, %s6
          $region44: #{tpu_custom_call.1} parent=40 // loop_header_branch
            %244 = sbr.rel (%p242) target = $region48
          $region45: #{tpu_custom_call.1} parent=40 // loop_body
            %v248 = vld [vmem:[%s246] sm:$0x3]
            %249 = vst [vmem:[%s247] sm:$0x3] %v248
          $region46: #{tpu_custom_call.1} parent=40 // loop_footer
            %s245 = sadd.s32 1, %s241
          $region47: #{tpu_custom_call.1} parent=40 // loop_footer_branch
            %240 = sbr.rel target = $region43
          $region48: #{tpu_custom_call.1} parent=40 // loop_exit
            _
        $region41: #{tpu_custom_call.1} parent=32 // pred_fallthru
          _
      $region33: #{tpu_custom_call.1} parent=28 // pred_fallthru
        _
      %263 = vnop
    $region29: #{tpu_custom_call.1} parent=1 // pred_fallthru
      _
    // Predicated region
    $region60: #{tpu_custom_call.1} parent=1 // pred_check
      _
    $region61: #{tpu_custom_call.1} parent=1 // pred_check_branch
      %265 = sbr.rel (0) target = $region63
    $region62: #{tpu_custom_call.1} parent=1 // pred_region
      %266 = dma.done [#allocation3], 128
    $region63: #{tpu_custom_call.1} parent=1 // pred_fallthru
      _
    // Predicated region
    $region64: #{tpu_custom_call.1} parent=1 // pred_check
      _
    $region65: #{tpu_custom_call.1} parent=1 // pred_check_branch
      %268 = sbr.rel (0) target = $region67
    $region66: #{tpu_custom_call.1} parent=1 // pred_region
      _
    $region67: #{tpu_custom_call.1} parent=1 // pred_fallthru
      _
    %269 = vsyncpa [#allocation3], 1

</llo_original>
